<compile_context>
chip_gen: v7x
topology: tpu7x:2x2x1
jax: 0.10.0
libtpu: 0.0.40
codegen_flags: <defaults>
</compile_context>

<pallas_src>
import functools

import jax
import jax.numpy as jnp
from jax.experimental import pallas as pl
from jax.experimental.pallas import tpu as pltpu


def _round_up(x, m):
    return (x + m - 1) // m * m


# ----------------------------------------------------------------------------- kernel
def _scaled_l2_norm_kernel(x_ref, s_ref, o_ref, *, eps):
    """One (1, C, t_hw) block: y = x * scale * rsqrt(sum_c x^2 + eps)."""
    x = x_ref[...].astype(jnp.float32)                 # (1, C, t_hw)
    ssq = jnp.sum(x * x, axis=-2, keepdims=True)       # (1, 1, t_hw) sublane reduce (XLU)
    inv = jax.lax.rsqrt(ssq + eps)                     # EUP rsqrt, no VPU divide
    o_ref[...] = (x * inv * s_ref[...]).astype(o_ref.dtype)


# ----------------------------------------------------------------------------- tiling
def _pick_tile(hw, c, itemsize):
    """Lane-dim (H*W) tile: multiple of 128, ~2 MiB per input block, and >= 2 grid
    steps along HW (v7x megacore) whenever HW is big enough for the split to matter."""
    if hw <= 256:
        return hw                                      # tiny: one full-extent block
    target_bytes = 2 * 1024 * 1024
    t = max(128, (target_bytes // (c * itemsize)) // 128 * 128)
    t = min(t, _round_up(pl.cdiv(hw, 2), 128))         # guarantee >= 2 parallel HW steps
    return t


# ----------------------------------------------------------------------------- wrapper
def scaled_l2_norm(x_nchw, scale, *, eps=1e-12, t_hw=None):
    """ScaledL2Norm forward. x_nchw: (N, C, H, W), scale: (C,). Returns (N, C, H, W)."""
    n, c, h, w = x_nchw.shape
    hw = h * w
    x = x_nchw.reshape(n, c, hw)                       # contiguous view: no HBM traffic
    if t_hw is None:
        t_hw = _pick_tile(hw, c, jnp.dtype(x_nchw.dtype).itemsize)

    out = pl.pallas_call(
        functools.partial(_scaled_l2_norm_kernel, eps=eps),
        out_shape=jax.ShapeDtypeStruct((n, c, hw), x_nchw.dtype),
        grid=(n, pl.cdiv(hw, t_hw)),
        in_specs=[pl.BlockSpec((1, c, t_hw), lambda i, j: (i, 0, j)),   # feature block
                  pl.BlockSpec((1, c, 1), lambda i, j: (0, 0, 0))],     # per-channel scale
        out_specs=pl.BlockSpec((1, c, t_hw), lambda i, j: (i, 0, j)),
        compiler_params=pltpu.CompilerParams(
            dimension_semantics=("parallel", "parallel")),
    )(x, scale.reshape(1, c, 1).astype(jnp.float32))

    return out.reshape(n, c, h, w)                     # contiguous view back to NCHW


# ----------------------------------------------------------------------------- reference
def scaled_l2_norm_ref(x_nchw, scale):
    xf = x_nchw.astype(jnp.float32)
    norm = jnp.sqrt(jnp.sum(xf * xf, axis=1, keepdims=True))
    return xf / norm * scale.astype(jnp.float32)[None, :, None, None]


# ----------------------------------------------------------------------------- main
if __name__ == "__main__":
    key = jax.random.PRNGKey(0)
    k1, k2, k3 = jax.random.split(key, 3)

    # 1) ScaledL2Norm(768, 20.0) as used in the SSD head; HW = 128 (single block).
    n, c, h, w = 1, 768, 8, 16
    x = jax.random.normal(k1, (n, c, h, w), jnp.float32)
    scale = jnp.full((c,), 20.0, jnp.float32)          # reset_parameters(): fill(initial_scale)
    y = jax.block_until_ready(scaled_l2_norm(x, scale))
    y_ref = scaled_l2_norm_ref(x, scale)
    assert y.shape == (n, c, h, w)
    assert jnp.max(jnp.abs(y - y_ref)) < 1e-4, float(jnp.max(jnp.abs(y - y_ref)))

    # 2) Small, odd shapes: C not a multiple of 128, HW = 63 (full-extent lane block,
    #    no pad / slice round trip).
    n2, c2, h2, w2 = 1, 96, 7, 9
    x2 = jax.random.normal(k2, (n2, c2, h2, w2), jnp.float32)
    scale2 = jnp.full((c2,), 5.0, jnp.float32)
    y2 = jax.block_until_ready(scaled_l2_norm(x2, scale2))
    y2_ref = scaled_l2_norm_ref(x2, scale2)
    assert y2.shape == (n2, c2, h2, w2)
    assert jnp.max(jnp.abs(y2 - y2_ref)) < 1e-4, float(jnp.max(jnp.abs(y2 - y2_ref)))

    # 3) HW = 460 -> t_hw = 256, grid (1, 2): exercises the masked tail block and the
    #    two-step "parallel" HW axis (v7x megacore path) without any padding copy.
    n3, c3, h3, w3 = 1, 256, 20, 23
    x3 = jax.random.normal(k3, (n3, c3, h3, w3), jnp.float32)
    scale3 = jnp.full((c3,), 10.0, jnp.float32)
    y3 = jax.block_until_ready(scaled_l2_norm(x3, scale3))
    y3_ref = scaled_l2_norm_ref(x3, scale3)
    assert y3.shape == (n3, c3, h3, w3)
    assert jnp.max(jnp.abs(y3 - y3_ref)) < 1e-4, float(jnp.max(jnp.abs(y3 - y3_ref)))

    # 4) bf16 I/O (half the HBM bytes), f32 accumulation in-kernel.
    y_bf = jax.block_until_ready(scaled_l2_norm(x.astype(jnp.bfloat16), scale))
    assert y_bf.dtype == jnp.bfloat16
    assert jnp.max(jnp.abs(y_bf.astype(jnp.float32) - y_ref)) < 5e-2

    print("KERNEL_OK")
</pallas_src>

<mosaic_0001>
module attributes {stable_mosaic.version = 11 : i64} {
  func.func @_scaled_l2_norm_kernel(%arg0: i32, %arg1: i32, %arg2: memref<1x768x128xf32, #tpu.memory_space<vmem>>, %arg3: memref<1x768x1xf32, #tpu.memory_space<vmem>>, %arg4: memref<1x768x128xf32, #tpu.memory_space<vmem>>) attributes {dimension_semantics = [#tpu.dimension_semantics<parallel>, #tpu.dimension_semantics<parallel>], iteration_bounds = array<i64: 1, 1>, scalar_prefetch = 0 : i64, scratch_operands = 0 : i64, tpu.core_type = #tpu.core_type<tc>, window_params = [{transform_indices = @transform_0, window_bounds = array<i64: 1, 768, 128>}, {pipeline_mode = #tpu.pipeline_mode<synchronous>, transform_indices = @transform_1, window_bounds = array<i64: 1, 768, 1>}, {transform_indices = @transform_2, window_bounds = array<i64: 1, 768, 128>}]} {
    %c0 = arith.constant 0 : index
    %c0_0 = arith.constant 0 : index
    %c0_1 = arith.constant 0 : index
    %0 = vector.load %arg2[%c0, %c0_0, %c0_1] : memref<1x768x128xf32, #tpu.memory_space<vmem>>, vector<1x768x128xf32>
    %1 = arith.mulf %0, %0 : vector<1x768x128xf32>
    %cst = arith.constant dense<0.000000e+00> : vector<1x128xf32>
    %2 = vector.multi_reduction <add>, %1, %cst [1] : vector<1x768x128xf32> to vector<1x128xf32>
    %3 = vector.shape_cast %2 : vector<1x128xf32> to vector<1x1x128xf32>
    %cst_2 = arith.constant 9.99999996E-13 : f32
    %4 = vector.broadcast %cst_2 : f32 to vector<1x1x128xf32>
    %5 = arith.addf %3, %4 : vector<1x1x128xf32>
    %6 = math.rsqrt %5 : vector<1x1x128xf32>
    %7 = vector.broadcast %6 : vector<1x1x128xf32> to vector<1x768x128xf32>
    %8 = arith.mulf %0, %7 : vector<1x768x128xf32>
    %c0_3 = arith.constant 0 : index
    %c0_4 = arith.constant 0 : index
    %c0_5 = arith.constant 0 : index
    %9 = vector.load %arg3[%c0_3, %c0_4, %c0_5] : memref<1x768x1xf32, #tpu.memory_space<vmem>>, vector<1x768x1xf32>
    %10 = vector.broadcast %9 : vector<1x768x1xf32> to vector<1x768x128xf32>
    %11 = arith.mulf %8, %10 : vector<1x768x128xf32>
    %c0_6 = arith.constant 0 : index
    %c0_7 = arith.constant 0 : index
    %c0_8 = arith.constant 0 : index
    %12 = vector.load %arg4[%c0_6, %c0_7, %c0_8] : memref<1x768x128xf32, #tpu.memory_space<vmem>>, vector<1x768x128xf32>
    tpu.vector_store %arg4[%c0_6, %c0_7, %c0_8], %11 {strides = array<i32>} : memref<1x768x128xf32, #tpu.memory_space<vmem>>, vector<1x768x128xf32>,
    return
  }
  func.func @transform_0(%arg0: i32, %arg1: i32) -> (i32, i32, i32) {
    %c0_i32 = arith.constant 0 : i32
    %c0_i32_0 = arith.constant 0 : i32
    return %arg0, %c0_i32, %arg1 : i32, i32, i32
  }
  func.func @transform_1(%arg0: i32, %arg1: i32) -> (i32, i32, i32) {
    %c0_i32 = arith.constant 0 : i32
    %c0_i32_0 = arith.constant 0 : i32
    %c0_i32_1 = arith.constant 0 : i32
    %c0_i32_2 = arith.constant 0 : i32
    return %c0_i32, %c0_i32_0, %c0_i32_1 : i32, i32, i32
  }
  func.func @transform_2(%arg0: i32, %arg1: i32) -> (i32, i32, i32) {
    %c0_i32 = arith.constant 0 : i32
    %c0_i32_0 = arith.constant 0 : i32
    return %arg0, %c0_i32, %arg1 : i32, i32, i32
  }
}

</mosaic_0001>

<llo_original>
// kernel: tpu_custom_call.1
$region0: #{tpu_custom_call.1}
  #allocation0 [shape = 'u32[]', space=smem, size = 0x4, offset = 0x4, fixed_abs, tag = 'smem constant byte address 0x4 - core index']
  #allocation1 [shape = 'u32[144,128]{1,0:T(1,128)}', space=vmem, size = 0x12000, scoped, tag = 'internal scratch']
  %s0 = inlined_call_operand.vmem [shape: f32[1,768,128], index: 0, kind: input, shape index: {}]
  %s1 = inlined_call_operand.vmem [shape: f32[1,768,1], index: 1, kind: input, shape index: {}]
  %s2 = inlined_call_operand.hbm [shape: f32[1,768,128], index: 2, kind: output, shape index: {}]
  %s3 = sld [smem:[#allocation0]]
  $region18: #{tpu_custom_call.1} parent=0
    _
  %s5 = ssub.s32 1, %s3
  %s6 = scalar_select 0, %s5, %s3
  $region1: #{tpu_custom_call.1} parent=0
    #allocation2 [shape = 'u8[393216]{0}', space=vmem, size = 0x60000, scoped, tag = 'output window, operand 0, single buffered']
    #allocation3 [shape = 's32[1]{0}', space=sflag, size = 0x4, scoped, tag = 'scoped memory for tpu_custom_call.1']
    %7 = vsyncpa [#allocation3], 0
    // Predicated region
    $region2: #{tpu_custom_call.1} parent=1 // pred_check
      _
    $region3: #{tpu_custom_call.1} parent=1 // pred_check_branch
      %9 = sbr.rel (0) target = $region5
    $region4: #{tpu_custom_call.1} parent=1 // pred_region
      _
    $region5: #{tpu_custom_call.1} parent=1 // pred_fallthru
      _
    // Predicated region
    $region6: #{tpu_custom_call.1} parent=1 // pred_check
      _
    $region7: #{tpu_custom_call.1} parent=1 // pred_check_branch
      %11 = sbr.rel (0) target = $region9
    $region8: #{tpu_custom_call.1} parent=1 // pred_region
      _
    $region9: #{tpu_custom_call.1} parent=1 // pred_fallthru
      _
    %v12 = vld [vmem:[%s0] sm:$0xff]
    %v13 = vld [vmem:[%s0 + $0x8] sm:$0xff]
    %v14 = vld [vmem:[%s0 + $0x10] sm:$0xff]
    %v15 = vld [vmem:[%s0 + $0x18] sm:$0xff]
    %v16 = vld [vmem:[%s0 + $0x20] sm:$0xff]
    %v17 = vld [vmem:[%s0 + $0x28] sm:$0xff]
    %v18 = vld [vmem:[%s0 + $0x30] sm:$0xff]
    %v19 = vld [vmem:[%s0 + $0x38] sm:$0xff]
    %v20 = vld [vmem:[%s0 + $0x40] sm:$0xff]
    %v21 = vld [vmem:[%s0 + $0x48] sm:$0xff]
    %v22 = vld [vmem:[%s0 + $0x50] sm:$0xff]
    %v23 = vld [vmem:[%s0 + $0x58] sm:$0xff]
    %v24 = vld [vmem:[%s0 + $0x60] sm:$0xff]
    %v25 = vld [vmem:[%s0 + $0x68] sm:$0xff]
    %v26 = vld [vmem:[%s0 + $0x70] sm:$0xff]
    %v27 = vld [vmem:[%s0 + $0x78] sm:$0xff]
    %v28 = vld [vmem:[%s0 + $0x80] sm:$0xff]
    %v29 = vld [vmem:[%s0 + $0x88] sm:$0xff]
    %v30 = vld [vmem:[%s0 + $0x90] sm:$0xff]
    %v31 = vld [vmem:[%s0 + $0x98] sm:$0xff]
    %v32 = vld [vmem:[%s0 + $0xa0] sm:$0xff]
    %v33 = vld [vmem:[%s0 + $0xa8] sm:$0xff]
    %v34 = vld [vmem:[%s0 + $0xb0] sm:$0xff]
    %v35 = vld [vmem:[%s0 + $0xb8] sm:$0xff]
    %v36 = vld [vmem:[%s0 + $0xc0] sm:$0xff]
    %v37 = vld [vmem:[%s0 + $0xc8] sm:$0xff]
    %v38 = vld [vmem:[%s0 + $0xd0] sm:$0xff]
    %v39 = vld [vmem:[%s0 + $0xd8] sm:$0xff]
    %v40 = vld [vmem:[%s0 + $0xe0] sm:$0xff]
    %v41 = vld [vmem:[%s0 + $0xe8] sm:$0xff]
    %v42 = vld [vmem:[%s0 + $0xf0] sm:$0xff]
    %v43 = vld [vmem:[%s0 + $0xf8] sm:$0xff]
    %v44 = vld [vmem:[%s0 + $0x100] sm:$0xff]
    %v45 = vld [vmem:[%s0 + $0x108] sm:$0xff]
    %v46 = vld [vmem:[%s0 + $0x110] sm:$0xff]
    %v47 = vld [vmem:[%s0 + $0x118] sm:$0xff]
    %v48 = vld [vmem:[%s0 + $0x120] sm:$0xff]
    %v49 = vld [vmem:[%s0 + $0x128] sm:$0xff]
    %v50 = vld [vmem:[%s0 + $0x130] sm:$0xff]
    %v51 = vld [vmem:[%s0 + $0x138] sm:$0xff]
    %v52 = vld [vmem:[%s0 + $0x140] sm:$0xff]
    %v53 = vld [vmem:[%s0 + $0x148] sm:$0xff]
    %v54 = vld [vmem:[%s0 + $0x150] sm:$0xff]
    %v55 = vld [vmem:[%s0 + $0x158] sm:$0xff]
    %v56 = vld [vmem:[%s0 + $0x160] sm:$0xff]
    %v57 = vld [vmem:[%s0 + $0x168] sm:$0xff]
    %v58 = vld [vmem:[%s0 + $0x170] sm:$0xff]
    %v59 = vld [vmem:[%s0 + $0x178] sm:$0xff]
    %v60 = vld [vmem:[%s0 + $0x180] sm:$0xff]
    %v61 = vld [vmem:[%s0 + $0x188] sm:$0xff]
    %v62 = vld [vmem:[%s0 + $0x190] sm:$0xff]
    %v63 = vld [vmem:[%s0 + $0x198] sm:$0xff]
    %v64 = vld [vmem:[%s0 + $0x1a0] sm:$0xff]
    %v65 = vld [vmem:[%s0 + $0x1a8] sm:$0xff]
    %v66 = vld [vmem:[%s0 + $0x1b0] sm:$0xff]
    %v67 = vld [vmem:[%s0 + $0x1b8] sm:$0xff]
    %v68 = vld [vmem:[%s0 + $0x1c0] sm:$0xff]
    %v69 = vld [vmem:[%s0 + $0x1c8] sm:$0xff]
    %v70 = vld [vmem:[%s0 + $0x1d0] sm:$0xff]
    %v71 = vld [vmem:[%s0 + $0x1d8] sm:$0xff]
    %v72 = vld [vmem:[%s0 + $0x1e0] sm:$0xff]
    %v73 = vld [vmem:[%s0 + $0x1e8] sm:$0xff]
    %v74 = vld [vmem:[%s0 + $0x1f0] sm:$0xff]
    %v75 = vld [vmem:[%s0 + $0x1f8] sm:$0xff]
    %v76 = vld [vmem:[%s0 + $0x200] sm:$0xff]
    %v77 = vld [vmem:[%s0 + $0x208] sm:$0xff]
    %v78 = vld [vmem:[%s0 + $0x210] sm:$0xff]
    %v79 = vld [vmem:[%s0 + $0x218] sm:$0xff]
    %v80 = vld [vmem:[%s0 + $0x220] sm:$0xff]
    %v81 = vld [vmem:[%s0 + $0x228] sm:$0xff]
    %v82 = vld [vmem:[%s0 + $0x230] sm:$0xff]
    %v83 = vld [vmem:[%s0 + $0x238] sm:$0xff]
    %v84 = vld [vmem:[%s0 + $0x240] sm:$0xff]
    %v85 = vld [vmem:[%s0 + $0x248] sm:$0xff]
    %v86 = vld [vmem:[%s0 + $0x250] sm:$0xff]
    %v87 = vld [vmem:[%s0 + $0x258] sm:$0xff]
    %v88 = vld [vmem:[%s0 + $0x260] sm:$0xff]
    %v89 = vld [vmem:[%s0 + $0x268] sm:$0xff]
    %v90 = vld [vmem:[%s0 + $0x270] sm:$0xff]
    %v91 = vld [vmem:[%s0 + $0x278] sm:$0xff]
    %v92 = vld [vmem:[%s0 + $0x280] sm:$0xff]
    %v93 = vld [vmem:[%s0 + $0x288] sm:$0xff]
    %v94 = vld [vmem:[%s0 + $0x290] sm:$0xff]
    %v95 = vld [vmem:[%s0 + $0x298] sm:$0xff]
    %v96 = vld [vmem:[%s0 + $0x2a0] sm:$0xff]
    %v97 = vld [vmem:[%s0 + $0x2a8] sm:$0xff]
    %v98 = vld [vmem:[%s0 + $0x2b0] sm:$0xff]
    %v99 = vld [vmem:[%s0 + $0x2b8] sm:$0xff]
    %v100 = vld [vmem:[%s0 + $0x2c0] sm:$0xff]
    %v101 = vld [vmem:[%s0 + $0x2c8] sm:$0xff]
    %v102 = vld [vmem:[%s0 + $0x2d0] sm:$0xff]
    %v103 = vld [vmem:[%s0 + $0x2d8] sm:$0xff]
    %v104 = vld [vmem:[%s0 + $0x2e0] sm:$0xff]
    %v105 = vld [vmem:[%s0 + $0x2e8] sm:$0xff]
    %v106 = vld [vmem:[%s0 + $0x2f0] sm:$0xff]
    %v107 = vld [vmem:[%s0 + $0x2f8] sm:$0xff]
    %v108 = vmul.f32 %v12, %v12
    %v109 = vmul.f32 %v13, %v13
    %v110 = vmul.f32 %v14, %v14
    %v111 = vmul.f32 %v15, %v15
    %v112 = vmul.f32 %v16, %v16
    %v113 = vmul.f32 %v17, %v17
    %v114 = vmul.f32 %v18, %v18
    %v115 = vmul.f32 %v19, %v19
    %v116 = vmul.f32 %v20, %v20
    %v117 = vmul.f32 %v21, %v21
    %v118 = vmul.f32 %v22, %v22
    %v119 = vmul.f32 %v23, %v23
    %v120 = vmul.f32 %v24, %v24
    %v121 = vmul.f32 %v25, %v25
    %v122 = vmul.f32 %v26, %v26
    %v123 = vmul.f32 %v27, %v27
    %v124 = vmul.f32 %v28, %v28
    %v125 = vmul.f32 %v29, %v29
    %v126 = vmul.f32 %v30, %v30
    %v127 = vmul.f32 %v31, %v31
    %v128 = vmul.f32 %v32, %v32
    %v129 = vmul.f32 %v33, %v33
    %v130 = vmul.f32 %v34, %v34
    %v131 = vmul.f32 %v35, %v35
    %v132 = vmul.f32 %v36, %v36
    %v133 = vmul.f32 %v37, %v37
    %v134 = vmul.f32 %v38, %v38
    %v135 = vmul.f32 %v39, %v39
    %v136 = vmul.f32 %v40, %v40
    %v137 = vmul.f32 %v41, %v41
    %v138 = vmul.f32 %v42, %v42
    %v139 = vmul.f32 %v43, %v43
    %v140 = vmul.f32 %v44, %v44
    %v141 = vmul.f32 %v45, %v45
    %v142 = vmul.f32 %v46, %v46
    %v143 = vmul.f32 %v47, %v47
    %v144 = vmul.f32 %v48, %v48
    %v145 = vmul.f32 %v49, %v49
    %v146 = vmul.f32 %v50, %v50
    %v147 = vmul.f32 %v51, %v51
    %v148 = vmul.f32 %v52, %v52
    %v149 = vmul.f32 %v53, %v53
    %v150 = vmul.f32 %v54, %v54
    %v151 = vmul.f32 %v55, %v55
    %v152 = vmul.f32 %v56, %v56
    %v153 = vmul.f32 %v57, %v57
    %v154 = vmul.f32 %v58, %v58
    %v155 = vmul.f32 %v59, %v59
    %v156 = vmul.f32 %v60, %v60
    %v157 = vmul.f32 %v61, %v61
    %v158 = vmul.f32 %v62, %v62
    %v159 = vmul.f32 %v63, %v63
    %v160 = vmul.f32 %v64, %v64
    %v161 = vmul.f32 %v65, %v65
    %v162 = vmul.f32 %v66, %v66
    %v163 = vmul.f32 %v67, %v67
    %v164 = vmul.f32 %v68, %v68
    %v165 = vmul.f32 %v69, %v69
    %v166 = vmul.f32 %v70, %v70
    %v167 = vmul.f32 %v71, %v71
    %v168 = vmul.f32 %v72, %v72
    %v169 = vmul.f32 %v73, %v73
    %v170 = vmul.f32 %v74, %v74
    %v171 = vmul.f32 %v75, %v75
    %v172 = vmul.f32 %v76, %v76
    %v173 = vmul.f32 %v77, %v77
    %v174 = vmul.f32 %v78, %v78
    %v175 = vmul.f32 %v79, %v79
    %v176 = vmul.f32 %v80, %v80
    %v177 = vmul.f32 %v81, %v81
    %v178 = vmul.f32 %v82, %v82
    %v179 = vmul.f32 %v83, %v83
    %v180 = vmul.f32 %v84, %v84
    %v181 = vmul.f32 %v85, %v85
    %v182 = vmul.f32 %v86, %v86
    %v183 = vmul.f32 %v87, %v87
    %v184 = vmul.f32 %v88, %v88
    %v185 = vmul.f32 %v89, %v89
    %v186 = vmul.f32 %v90, %v90
    %v187 = vmul.f32 %v91, %v91
    %v188 = vmul.f32 %v92, %v92
    %v189 = vmul.f32 %v93, %v93
    %v190 = vmul.f32 %v94, %v94
    %v191 = vmul.f32 %v95, %v95
    %v192 = vmul.f32 %v96, %v96
    %v193 = vmul.f32 %v97, %v97
    %v194 = vmul.f32 %v98, %v98
    %v195 = vmul.f32 %v99, %v99
    %v196 = vmul.f32 %v100, %v100
    %v197 = vmul.f32 %v101, %v101
    %v198 = vmul.f32 %v102, %v102
    %v199 = vmul.f32 %v103, %v103
    %v200 = vmul.f32 %v104, %v104
    %v201 = vmul.f32 %v105, %v105
    %v202 = vmul.f32 %v106, %v106
    %v203 = vmul.f32 %v107, %v107
    %v204 = vadd.f32 %v108, %v109
    %v205 = vadd.f32 %v204, %v110
    %v206 = vadd.f32 %v205, %v111
    %v207 = vadd.f32 %v206, %v112
    %v208 = vadd.f32 %v207, %v113
    %v209 = vadd.f32 %v208, %v114
    %v210 = vadd.f32 %v209, %v115
    %v211 = vadd.f32 %v210, %v116
    %v212 = vadd.f32 %v211, %v117
    %v213 = vadd.f32 %v212, %v118
    %v214 = vadd.f32 %v213, %v119
    %v215 = vadd.f32 %v214, %v120
    %v216 = vadd.f32 %v215, %v121
    %v217 = vadd.f32 %v216, %v122
    %v218 = vadd.f32 %v217, %v123
    %v219 = vadd.f32 %v218, %v124
    %v220 = vadd.f32 %v219, %v125
    %v221 = vadd.f32 %v220, %v126
    %v222 = vadd.f32 %v221, %v127
    %v223 = vadd.f32 %v222, %v128
    %v224 = vadd.f32 %v223, %v129
    %v225 = vadd.f32 %v224, %v130
    %v226 = vadd.f32 %v225, %v131
    %v227 = vadd.f32 %v226, %v132
    %v228 = vadd.f32 %v227, %v133
    %v229 = vadd.f32 %v228, %v134
    %v230 = vadd.f32 %v229, %v135
    %v231 = vadd.f32 %v230, %v136
    %v232 = vadd.f32 %v231, %v137
    %v233 = vadd.f32 %v232, %v138
    %v234 = vadd.f32 %v233, %v139
    %v235 = vadd.f32 %v234, %v140
    %v236 = vadd.f32 %v235, %v141
    %v237 = vadd.f32 %v236, %v142
    %v238 = vadd.f32 %v237, %v143
    %v239 = vadd.f32 %v238, %v144
    %v240 = vadd.f32 %v239, %v145
    %v241 = vadd.f32 %v240, %v146
    %v242 = vadd.f32 %v241, %v147
    %v243 = vadd.f32 %v242, %v148
    %v244 = vadd.f32 %v243, %v149
    %v245 = vadd.f32 %v244, %v150
    %v246 = vadd.f32 %v245, %v151
    %v247 = vadd.f32 %v246, %v152
    %v248 = vadd.f32 %v247, %v153
    %v249 = vadd.f32 %v248, %v154
    %v250 = vadd.f32 %v249, %v155
    %v251 = vadd.f32 %v250, %v156
    %v252 = vadd.f32 %v251, %v157
    %v253 = vadd.f32 %v252, %v158
    %v254 = vadd.f32 %v253, %v159
    %v255 = vadd.f32 %v254, %v160
    %v256 = vadd.f32 %v255, %v161
    %v257 = vadd.f32 %v256, %v162
    %v258 = vadd.f32 %v257, %v163
    %v259 = vadd.f32 %v258, %v164
    %v260 = vadd.f32 %v259, %v165
    %v261 = vadd.f32 %v260, %v166
    %v262 = vadd.f32 %v261, %v167
    %v263 = vadd.f32 %v262, %v168
    %v264 = vadd.f32 %v263, %v169
    %v265 = vadd.f32 %v264, %v170
    %v266 = vadd.f32 %v265, %v171
    %v267 = vadd.f32 %v266, %v172
    %v268 = vadd.f32 %v267, %v173
    %v269 = vadd.f32 %v268, %v174
    %v270 = vadd.f32 %v269, %v175
    %v271 = vadd.f32 %v270, %v176
    %v272 = vadd.f32 %v271, %v177
    %v273 = vadd.f32 %v272, %v178
    %v274 = vadd.f32 %v273, %v179
    %v275 = vadd.f32 %v274, %v180
    %v276 = vadd.f32 %v275, %v181
    %v277 = vadd.f32 %v276, %v182
    %v278 = vadd.f32 %v277, %v183
    %v279 = vadd.f32 %v278, %v184
    %v280 = vadd.f32 %v279, %v185
    %v281 = vadd.f32 %v280, %v186
    %v282 = vadd.f32 %v281, %v187
    %v283 = vadd.f32 %v282, %v188
    %v284 = vadd.f32 %v283, %v189
    %v285 = vadd.f32 %v284, %v190
    %v286 = vadd.f32 %v285, %v191
    %v287 = vadd.f32 %v286, %v192
    %v288 = vadd.f32 %v287, %v193
    %v289 = vadd.f32 %v288, %v194
    %v290 = vadd.f32 %v289, %v195
    %v291 = vadd.f32 %v290, %v196
    %v292 = vadd.f32 %v291, %v197
    %v293 = vadd.f32 %v292, %v198
    %v294 = vadd.f32 %v293, %v199
    %v295 = vadd.f32 %v294, %v200
    %v296 = vadd.f32 %v295, %v201
    %v297 = vadd.f32 %v296, %v202
    %v298 = vadd.f32 %v297, %v203
    %v299 = vrot.slane %v298, 4
    %v300 = vadd.f32 %v298, %v299
    %v301 = vrot.slane %v300, 2
    %v302 = vadd.f32 %v300, %v301
    %v303 = vrot.slane %v302, 1
    %v304 = vadd.f32 %v302, %v303
    %v305 = vadd.f32 %v304, 1e-12
    %v306 = vrsqrt.pop %v305
    %v307 = vmul.f32 %v12, %v306
    %v308 = vmul.f32 %v13, %v306
    %v309 = vmul.f32 %v14, %v306
    %v310 = vmul.f32 %v15, %v306
    %v311 = vmul.f32 %v16, %v306
    %v312 = vmul.f32 %v17, %v306
    %v313 = vmul.f32 %v18, %v306
    %v314 = vmul.f32 %v19, %v306
    %v315 = vmul.f32 %v20, %v306
    %v316 = vmul.f32 %v21, %v306
    %v317 = vmul.f32 %v22, %v306
    %v318 = vmul.f32 %v23, %v306
    %v319 = vmul.f32 %v24, %v306
    %v320 = vmul.f32 %v25, %v306
    %v321 = vmul.f32 %v26, %v306
    %v322 = vmul.f32 %v27, %v306
    %v323 = vmul.f32 %v28, %v306
    %v324 = vmul.f32 %v29, %v306
    %v325 = vmul.f32 %v30, %v306
    %v326 = vmul.f32 %v31, %v306
    %v327 = vmul.f32 %v32, %v306
    %v328 = vmul.f32 %v33, %v306
    %v329 = vmul.f32 %v34, %v306
    %v330 = vmul.f32 %v35, %v306
    %v331 = vmul.f32 %v36, %v306
    %v332 = vmul.f32 %v37, %v306
    %v333 = vmul.f32 %v38, %v306
    %v334 = vmul.f32 %v39, %v306
    %v335 = vmul.f32 %v40, %v306
    %v336 = vmul.f32 %v41, %v306
    %v337 = vmul.f32 %v42, %v306
    %v338 = vmul.f32 %v43, %v306
    %v339 = vmul.f32 %v44, %v306
    %v340 = vmul.f32 %v45, %v306
    %v341 = vmul.f32 %v46, %v306
    %v342 = vmul.f32 %v47, %v306
    %v343 = vmul.f32 %v48, %v306
    %v344 = vmul.f32 %v49, %v306
    %v345 = vmul.f32 %v50, %v306
    %v346 = vmul.f32 %v51, %v306
    %v347 = vmul.f32 %v52, %v306
    %v348 = vmul.f32 %v53, %v306
    %v349 = vmul.f32 %v54, %v306
    %v350 = vmul.f32 %v55, %v306
    %v351 = vmul.f32 %v56, %v306
    %v352 = vmul.f32 %v57, %v306
    %v353 = vmul.f32 %v58, %v306
    %v354 = vmul.f32 %v59, %v306
    %v355 = vmul.f32 %v60, %v306
    %v356 = vmul.f32 %v61, %v306
    %v357 = vmul.f32 %v62, %v306
    %v358 = vmul.f32 %v63, %v306
    %v359 = vmul.f32 %v64, %v306
    %v360 = vmul.f32 %v65, %v306
    %v361 = vmul.f32 %v66, %v306
    %v362 = vmul.f32 %v67, %v306
    %v363 = vmul.f32 %v68, %v306
    %v364 = vmul.f32 %v69, %v306
    %v365 = vmul.f32 %v70, %v306
    %v366 = vmul.f32 %v71, %v306
    %v367 = vmul.f32 %v72, %v306
    %v368 = vmul.f32 %v73, %v306
    %v369 = vmul.f32 %v74, %v306
    %v370 = vmul.f32 %v75, %v306
    %v371 = vmul.f32 %v76, %v306
    %v372 = vmul.f32 %v77, %v306
    %v373 = vmul.f32 %v78, %v306
    %v374 = vmul.f32 %v79, %v306
    %v375 = vmul.f32 %v80, %v306
    %v376 = vmul.f32 %v81, %v306
    %v377 = vmul.f32 %v82, %v306
    %v378 = vmul.f32 %v83, %v306
    %v379 = vmul.f32 %v84, %v306
    %v380 = vmul.f32 %v85, %v306
    %v381 = vmul.f32 %v86, %v306
    %v382 = vmul.f32 %v87, %v306
    %v383 = vmul.f32 %v88, %v306
    %v384 = vmul.f32 %v89, %v306
    %v385 = vmul.f32 %v90, %v306
    %v386 = vmul.f32 %v91, %v306
    %v387 = vmul.f32 %v92, %v306
    %v388 = vmul.f32 %v93, %v306
    %v389 = vmul.f32 %v94, %v306
    %v390 = vmul.f32 %v95, %v306
    %v391 = vmul.f32 %v96, %v306
    %v392 = vmul.f32 %v97, %v306
    %v393 = vmul.f32 %v98, %v306
    %v394 = vmul.f32 %v99, %v306
    %v395 = vmul.f32 %v100, %v306
    %v396 = vmul.f32 %v101, %v306
    %v397 = vmul.f32 %v102, %v306
    %v398 = vmul.f32 %v103, %v306
    %v399 = vmul.f32 %v104, %v306
    %v400 = vmul.f32 %v105, %v306
    %v401 = vmul.f32 %v106, %v306
    %v402 = vmul.f32 %v107, %v306
    %v403 = vld [vmem:[%s1] sm:$0xff]
    %v404 = vld [vmem:[%s1 + $0x8] sm:$0xff]
    %v405 = vld [vmem:[%s1 + $0x10] sm:$0xff]
    %v406 = vld [vmem:[%s1 + $0x18] sm:$0xff]
    %v407 = vld [vmem:[%s1 + $0x20] sm:$0xff]
    %v408 = vld [vmem:[%s1 + $0x28] sm:$0xff]
    %v409 = vld [vmem:[%s1 + $0x30] sm:$0xff]
    %v410 = vld [vmem:[%s1 + $0x38] sm:$0xff]
    %v411 = vld [vmem:[%s1 + $0x40] sm:$0xff]
    %v412 = vld [vmem:[%s1 + $0x48] sm:$0xff]
    %v413 = vld [vmem:[%s1 + $0x50] sm:$0xff]
    %v414 = vld [vmem:[%s1 + $0x58] sm:$0xff]
    %v415 = vld [vmem:[%s1 + $0x60] sm:$0xff]
    %v416 = vld [vmem:[%s1 + $0x68] sm:$0xff]
    %v417 = vld [vmem:[%s1 + $0x70] sm:$0xff]
    %v418 = vld [vmem:[%s1 + $0x78] sm:$0xff]
    %v419 = vld [vmem:[%s1 + $0x80] sm:$0xff]
    %v420 = vld [vmem:[%s1 + $0x88] sm:$0xff]
    %v421 = vld [vmem:[%s1 + $0x90] sm:$0xff]
    %v422 = vld [vmem:[%s1 + $0x98] sm:$0xff]
    %v423 = vld [vmem:[%s1 + $0xa0] sm:$0xff]
    %v424 = vld [vmem:[%s1 + $0xa8] sm:$0xff]
    %v425 = vld [vmem:[%s1 + $0xb0] sm:$0xff]
    %v426 = vld [vmem:[%s1 + $0xb8] sm:$0xff]
    %v427 = vld [vmem:[%s1 + $0xc0] sm:$0xff]
    %v428 = vld [vmem:[%s1 + $0xc8] sm:$0xff]
    %v429 = vld [vmem:[%s1 + $0xd0] sm:$0xff]
    %v430 = vld [vmem:[%s1 + $0xd8] sm:$0xff]
    %v431 = vld [vmem:[%s1 + $0xe0] sm:$0xff]
    %v432 = vld [vmem:[%s1 + $0xe8] sm:$0xff]
    %v433 = vld [vmem:[%s1 + $0xf0] sm:$0xff]
    %v434 = vld [vmem:[%s1 + $0xf8] sm:$0xff]
    %v435 = vld [vmem:[%s1 + $0x100] sm:$0xff]
    %v436 = vld [vmem:[%s1 + $0x108] sm:$0xff]
    %v437 = vld [vmem:[%s1 + $0x110] sm:$0xff]
    %v438 = vld [vmem:[%s1 + $0x118] sm:$0xff]
    %v439 = vld [vmem:[%s1 + $0x120] sm:$0xff]
    %v440 = vld [vmem:[%s1 + $0x128] sm:$0xff]
    %v441 = vld [vmem:[%s1 + $0x130] sm:$0xff]
    %v442 = vld [vmem:[%s1 + $0x138] sm:$0xff]
    %v443 = vld [vmem:[%s1 + $0x140] sm:$0xff]
    %v444 = vld [vmem:[%s1 + $0x148] sm:$0xff]
    %v445 = vld [vmem:[%s1 + $0x150] sm:$0xff]
    %v446 = vld [vmem:[%s1 + $0x158] sm:$0xff]
    %v447 = vld [vmem:[%s1 + $0x160] sm:$0xff]
    %v448 = vld [vmem:[%s1 + $0x168] sm:$0xff]
    %v449 = vld [vmem:[%s1 + $0x170] sm:$0xff]
    %v450 = vld [vmem:[%s1 + $0x178] sm:$0xff]
    %v451 = vld [vmem:[%s1 + $0x180] sm:$0xff]
    %v452 = vld [vmem:[%s1 + $0x188] sm:$0xff]
    %v453 = vld [vmem:[%s1 + $0x190] sm:$0xff]
    %v454 = vld [vmem:[%s1 + $0x198] sm:$0xff]
    %v455 = vld [vmem:[%s1 + $0x1a0] sm:$0xff]
    %v456 = vld [vmem:[%s1 + $0x1a8] sm:$0xff]
    %v457 = vld [vmem:[%s1 + $0x1b0] sm:$0xff]
    %v458 = vld [vmem:[%s1 + $0x1b8] sm:$0xff]
    %v459 = vld [vmem:[%s1 + $0x1c0] sm:$0xff]
    %v460 = vld [vmem:[%s1 + $0x1c8] sm:$0xff]
    %v461 = vld [vmem:[%s1 + $0x1d0] sm:$0xff]
    %v462 = vld [vmem:[%s1 + $0x1d8] sm:$0xff]
    %v463 = vld [vmem:[%s1 + $0x1e0] sm:$0xff]
    %v464 = vld [vmem:[%s1 + $0x1e8] sm:$0xff]
    %v465 = vld [vmem:[%s1 + $0x1f0] sm:$0xff]
    %v466 = vld [vmem:[%s1 + $0x1f8] sm:$0xff]
    %v467 = vld [vmem:[%s1 + $0x200] sm:$0xff]
    %v468 = vld [vmem:[%s1 + $0x208] sm:$0xff]
    %v469 = vld [vmem:[%s1 + $0x210] sm:$0xff]
    %v470 = vld [vmem:[%s1 + $0x218] sm:$0xff]
    %v471 = vld [vmem:[%s1 + $0x220] sm:$0xff]
    %v472 = vld [vmem:[%s1 + $0x228] sm:$0xff]
    %v473 = vld [vmem:[%s1 + $0x230] sm:$0xff]
    %v474 = vld [vmem:[%s1 + $0x238] sm:$0xff]
    %v475 = vld [vmem:[%s1 + $0x240] sm:$0xff]
    %v476 = vld [vmem:[%s1 + $0x248] sm:$0xff]
    %v477 = vld [vmem:[%s1 + $0x250] sm:$0xff]
    %v478 = vld [vmem:[%s1 + $0x258] sm:$0xff]
    %v479 = vld [vmem:[%s1 + $0x260] sm:$0xff]
    %v480 = vld [vmem:[%s1 + $0x268] sm:$0xff]
    %v481 = vld [vmem:[%s1 + $0x270] sm:$0xff]
    %v482 = vld [vmem:[%s1 + $0x278] sm:$0xff]
    %v483 = vld [vmem:[%s1 + $0x280] sm:$0xff]
    %v484 = vld [vmem:[%s1 + $0x288] sm:$0xff]
    %v485 = vld [vmem:[%s1 + $0x290] sm:$0xff]
    %v486 = vld [vmem:[%s1 + $0x298] sm:$0xff]
    %v487 = vld [vmem:[%s1 + $0x2a0] sm:$0xff]
    %v488 = vld [vmem:[%s1 + $0x2a8] sm:$0xff]
    %v489 = vld [vmem:[%s1 + $0x2b0] sm:$0xff]
    %v490 = vld [vmem:[%s1 + $0x2b8] sm:$0xff]
    %v491 = vld [vmem:[%s1 + $0x2c0] sm:$0xff]
    %v492 = vld [vmem:[%s1 + $0x2c8] sm:$0xff]
    %v493 = vld [vmem:[%s1 + $0x2d0] sm:$0xff]
    %v494 = vld [vmem:[%s1 + $0x2d8] sm:$0xff]
    %v495 = vld [vmem:[%s1 + $0x2e0] sm:$0xff]
    %v496 = vld [vmem:[%s1 + $0x2e8] sm:$0xff]
    %v497 = vld [vmem:[%s1 + $0x2f0] sm:$0xff]
    %v498 = vld [vmem:[%s1 + $0x2f8] sm:$0xff]
    %500 = vset.pattern.permute.xlu0 0
    %501 = vperm.xlu0 %500, %v403
    %v502 = vpop.permute.xlu0 %501
    %505 = vset.pattern.permute.xlu0 0
    %506 = vperm.xlu0 %505, %v404
    %v507 = vpop.permute.xlu0 %506
    %510 = vset.pattern.permute.xlu0 0
    %511 = vperm.xlu0 %510, %v405
    %v512 = vpop.permute.xlu0 %511
    %515 = vset.pattern.permute.xlu0 0
    %516 = vperm.xlu0 %515, %v406
    %v517 = vpop.permute.xlu0 %516
    %520 = vset.pattern.permute.xlu0 0
    %521 = vperm.xlu0 %520, %v407
    %v522 = vpop.permute.xlu0 %521
    %525 = vset.pattern.permute.xlu0 0
    %526 = vperm.xlu0 %525, %v408
    %v527 = vpop.permute.xlu0 %526
    %530 = vset.pattern.permute.xlu0 0
    %531 = vperm.xlu0 %530, %v409
    %v532 = vpop.permute.xlu0 %531
    %535 = vset.pattern.permute.xlu0 0
    %536 = vperm.xlu0 %535, %v410
    %v537 = vpop.permute.xlu0 %536
    %540 = vset.pattern.permute.xlu0 0
    %541 = vperm.xlu0 %540, %v411
    %v542 = vpop.permute.xlu0 %541
    %545 = vset.pattern.permute.xlu0 0
    %546 = vperm.xlu0 %545, %v412
    %v547 = vpop.permute.xlu0 %546
    %550 = vset.pattern.permute.xlu0 0
    %551 = vperm.xlu0 %550, %v413
    %v552 = vpop.permute.xlu0 %551
    %555 = vset.pattern.permute.xlu0 0
    %556 = vperm.xlu0 %555, %v414
    %v557 = vpop.permute.xlu0 %556
    %560 = vset.pattern.permute.xlu0 0
    %561 = vperm.xlu0 %560, %v415
    %v562 = vpop.permute.xlu0 %561
    %565 = vset.pattern.permute.xlu0 0
    %566 = vperm.xlu0 %565, %v416
    %v567 = vpop.permute.xlu0 %566
    %570 = vset.pattern.permute.xlu0 0
    %571 = vperm.xlu0 %570, %v417
    %v572 = vpop.permute.xlu0 %571
    %575 = vset.pattern.permute.xlu0 0
    %576 = vperm.xlu0 %575, %v418
    %v577 = vpop.permute.xlu0 %576
    %580 = vset.pattern.permute.xlu0 0
    %581 = vperm.xlu0 %580, %v419
    %v582 = vpop.permute.xlu0 %581
    %585 = vset.pattern.permute.xlu0 0
    %586 = vperm.xlu0 %585, %v420
    %v587 = vpop.permute.xlu0 %586
    %590 = vset.pattern.permute.xlu0 0
    %591 = vperm.xlu0 %590, %v421
    %v592 = vpop.permute.xlu0 %591
    %595 = vset.pattern.permute.xlu0 0
    %596 = vperm.xlu0 %595, %v422
    %v597 = vpop.permute.xlu0 %596
    %600 = vset.pattern.permute.xlu0 0
    %601 = vperm.xlu0 %600, %v423
    %v602 = vpop.permute.xlu0 %601
    %605 = vset.pattern.permute.xlu0 0
    %606 = vperm.xlu0 %605, %v424
    %v607 = vpop.permute.xlu0 %606
    %610 = vset.pattern.permute.xlu0 0
    %611 = vperm.xlu0 %610, %v425
    %v612 = vpop.permute.xlu0 %611
    %615 = vset.pattern.permute.xlu0 0
    %616 = vperm.xlu0 %615, %v426
    %v617 = vpop.permute.xlu0 %616
    %620 = vset.pattern.permute.xlu0 0
    %621 = vperm.xlu0 %620, %v427
    %v622 = vpop.permute.xlu0 %621
    %625 = vset.pattern.permute.xlu0 0
    %626 = vperm.xlu0 %625, %v428
    %v627 = vpop.permute.xlu0 %626
    %630 = vset.pattern.permute.xlu0 0
    %631 = vperm.xlu0 %630, %v429
    %v632 = vpop.permute.xlu0 %631
    %635 = vset.pattern.permute.xlu0 0
    %636 = vperm.xlu0 %635, %v430
    %v637 = vpop.permute.xlu0 %636
    %640 = vset.pattern.permute.xlu0 0
    %641 = vperm.xlu0 %640, %v431
    %v642 = vpop.permute.xlu0 %641
    %645 = vset.pattern.permute.xlu0 0
    %646 = vperm.xlu0 %645, %v432
    %v647 = vpop.permute.xlu0 %646
    %650 = vset.pattern.permute.xlu0 0
    %651 = vperm.xlu0 %650, %v433
    %v652 = vpop.permute.xlu0 %651
    %655 = vset.pattern.permute.xlu0 0
    %656 = vperm.xlu0 %655, %v434
    %v657 = vpop.permute.xlu0 %656
    %660 = vset.pattern.permute.xlu0 0
    %661 = vperm.xlu0 %660, %v435
    %v662 = vpop.permute.xlu0 %661
    %665 = vset.pattern.permute.xlu0 0
    %666 = vperm.xlu0 %665, %v436
    %v667 = vpop.permute.xlu0 %666
    %670 = vset.pattern.permute.xlu0 0
    %671 = vperm.xlu0 %670, %v437
    %v672 = vpop.permute.xlu0 %671
    %675 = vset.pattern.permute.xlu0 0
    %676 = vperm.xlu0 %675, %v438
    %v677 = vpop.permute.xlu0 %676
    %680 = vset.pattern.permute.xlu0 0
    %681 = vperm.xlu0 %680, %v439
    %v682 = vpop.permute.xlu0 %681
    %685 = vset.pattern.permute.xlu0 0
    %686 = vperm.xlu0 %685, %v440
    %v687 = vpop.permute.xlu0 %686
    %690 = vset.pattern.permute.xlu0 0
    %691 = vperm.xlu0 %690, %v441
    %v692 = vpop.permute.xlu0 %691
    %695 = vset.pattern.permute.xlu0 0
    %696 = vperm.xlu0 %695, %v442
    %v697 = vpop.permute.xlu0 %696
    %700 = vset.pattern.permute.xlu0 0
    %701 = vperm.xlu0 %700, %v443
    %v702 = vpop.permute.xlu0 %701
    %705 = vset.pattern.permute.xlu0 0
    %706 = vperm.xlu0 %705, %v444
    %v707 = vpop.permute.xlu0 %706
    %710 = vset.pattern.permute.xlu0 0
    %711 = vperm.xlu0 %710, %v445
    %v712 = vpop.permute.xlu0 %711
    %715 = vset.pattern.permute.xlu0 0
    %716 = vperm.xlu0 %715, %v446
    %v717 = vpop.permute.xlu0 %716
    %720 = vset.pattern.permute.xlu0 0
    %721 = vperm.xlu0 %720, %v447
    %v722 = vpop.permute.xlu0 %721
    %725 = vset.pattern.permute.xlu0 0
    %726 = vperm.xlu0 %725, %v448
    %v727 = vpop.permute.xlu0 %726
    %730 = vset.pattern.permute.xlu0 0
    %731 = vperm.xlu0 %730, %v449
    %v732 = vpop.permute.xlu0 %731
    %735 = vset.pattern.permute.xlu0 0
    %736 = vperm.xlu0 %735, %v450
    %v737 = vpop.permute.xlu0 %736
    %740 = vset.pattern.permute.xlu0 0
    %741 = vperm.xlu0 %740, %v451
    %v742 = vpop.permute.xlu0 %741
    %745 = vset.pattern.permute.xlu0 0
    %746 = vperm.xlu0 %745, %v452
    %v747 = vpop.permute.xlu0 %746
    %750 = vset.pattern.permute.xlu0 0
    %751 = vperm.xlu0 %750, %v453
    %v752 = vpop.permute.xlu0 %751
    %755 = vset.pattern.permute.xlu0 0
    %756 = vperm.xlu0 %755, %v454
    %v757 = vpop.permute.xlu0 %756
    %760 = vset.pattern.permute.xlu0 0
    %761 = vperm.xlu0 %760, %v455
    %v762 = vpop.permute.xlu0 %761
    %765 = vset.pattern.permute.xlu0 0
    %766 = vperm.xlu0 %765, %v456
    %v767 = vpop.permute.xlu0 %766
    %770 = vset.pattern.permute.xlu0 0
    %771 = vperm.xlu0 %770, %v457
    %v772 = vpop.permute.xlu0 %771
    %775 = vset.pattern.permute.xlu0 0
    %776 = vperm.xlu0 %775, %v458
    %v777 = vpop.permute.xlu0 %776
    %780 = vset.pattern.permute.xlu0 0
    %781 = vperm.xlu0 %780, %v459
    %v782 = vpop.permute.xlu0 %781
    %785 = vset.pattern.permute.xlu0 0
    %786 = vperm.xlu0 %785, %v460
    %v787 = vpop.permute.xlu0 %786
    %790 = vset.pattern.permute.xlu0 0
    %791 = vperm.xlu0 %790, %v461
    %v792 = vpop.permute.xlu0 %791
    %795 = vset.pattern.permute.xlu0 0
    %796 = vperm.xlu0 %795, %v462
    %v797 = vpop.permute.xlu0 %796
    %800 = vset.pattern.permute.xlu0 0
    %801 = vperm.xlu0 %800, %v463
    %v802 = vpop.permute.xlu0 %801
    %805 = vset.pattern.permute.xlu0 0
    %806 = vperm.xlu0 %805, %v464
    %v807 = vpop.permute.xlu0 %806
    %810 = vset.pattern.permute.xlu0 0
    %811 = vperm.xlu0 %810, %v465
    %v812 = vpop.permute.xlu0 %811
    %815 = vset.pattern.permute.xlu0 0
    %816 = vperm.xlu0 %815, %v466
    %v817 = vpop.permute.xlu0 %816
    %820 = vset.pattern.permute.xlu0 0
    %821 = vperm.xlu0 %820, %v467
    %v822 = vpop.permute.xlu0 %821
    %825 = vset.pattern.permute.xlu0 0
    %826 = vperm.xlu0 %825, %v468
    %v827 = vpop.permute.xlu0 %826
    %830 = vset.pattern.permute.xlu0 0
    %831 = vperm.xlu0 %830, %v469
    %v832 = vpop.permute.xlu0 %831
    %835 = vset.pattern.permute.xlu0 0
    %836 = vperm.xlu0 %835, %v470
    %v837 = vpop.permute.xlu0 %836
    %840 = vset.pattern.permute.xlu0 0
    %841 = vperm.xlu0 %840, %v471
    %v842 = vpop.permute.xlu0 %841
    %845 = vset.pattern.permute.xlu0 0
    %846 = vperm.xlu0 %845, %v472
    %v847 = vpop.permute.xlu0 %846
    %850 = vset.pattern.permute.xlu0 0
    %851 = vperm.xlu0 %850, %v473
    %v852 = vpop.permute.xlu0 %851
    %855 = vset.pattern.permute.xlu0 0
    %856 = vperm.xlu0 %855, %v474
    %v857 = vpop.permute.xlu0 %856
    %860 = vset.pattern.permute.xlu0 0
    %861 = vperm.xlu0 %860, %v475
    %v862 = vpop.permute.xlu0 %861
    %865 = vset.pattern.permute.xlu0 0
    %866 = vperm.xlu0 %865, %v476
    %v867 = vpop.permute.xlu0 %866
    %870 = vset.pattern.permute.xlu0 0
    %871 = vperm.xlu0 %870, %v477
    %v872 = vpop.permute.xlu0 %871
    %875 = vset.pattern.permute.xlu0 0
    %876 = vperm.xlu0 %875, %v478
    %v877 = vpop.permute.xlu0 %876
    %880 = vset.pattern.permute.xlu0 0
    %881 = vperm.xlu0 %880, %v479
    %v882 = vpop.permute.xlu0 %881
    %885 = vset.pattern.permute.xlu0 0
    %886 = vperm.xlu0 %885, %v480
    %v887 = vpop.permute.xlu0 %886
    %890 = vset.pattern.permute.xlu0 0
    %891 = vperm.xlu0 %890, %v481
    %v892 = vpop.permute.xlu0 %891
    %895 = vset.pattern.permute.xlu0 0
    %896 = vperm.xlu0 %895, %v482
    %v897 = vpop.permute.xlu0 %896
    %900 = vset.pattern.permute.xlu0 0
    %901 = vperm.xlu0 %900, %v483
    %v902 = vpop.permute.xlu0 %901
    %905 = vset.pattern.permute.xlu0 0
    %906 = vperm.xlu0 %905, %v484
    %v907 = vpop.permute.xlu0 %906
    %910 = vset.pattern.permute.xlu0 0
    %911 = vperm.xlu0 %910, %v485
    %v912 = vpop.permute.xlu0 %911
    %915 = vset.pattern.permute.xlu0 0
    %916 = vperm.xlu0 %915, %v486
    %v917 = vpop.permute.xlu0 %916
    %920 = vset.pattern.permute.xlu0 0
    %921 = vperm.xlu0 %920, %v487
    %v922 = vpop.permute.xlu0 %921
    %925 = vset.pattern.permute.xlu0 0
    %926 = vperm.xlu0 %925, %v488
    %v927 = vpop.permute.xlu0 %926
    %930 = vset.pattern.permute.xlu0 0
    %931 = vperm.xlu0 %930, %v489
    %v932 = vpop.permute.xlu0 %931
    %935 = vset.pattern.permute.xlu0 0
    %936 = vperm.xlu0 %935, %v490
    %v937 = vpop.permute.xlu0 %936
    %940 = vset.pattern.permute.xlu0 0
    %941 = vperm.xlu0 %940, %v491
    %v942 = vpop.permute.xlu0 %941
    %945 = vset.pattern.permute.xlu0 0
    %946 = vperm.xlu0 %945, %v492
    %v947 = vpop.permute.xlu0 %946
    %950 = vset.pattern.permute.xlu0 0
    %951 = vperm.xlu0 %950, %v493
    %v952 = vpop.permute.xlu0 %951
    %955 = vset.pattern.permute.xlu0 0
    %956 = vperm.xlu0 %955, %v494
    %v957 = vpop.permute.xlu0 %956
    %960 = vset.pattern.permute.xlu0 0
    %961 = vperm.xlu0 %960, %v495
    %v962 = vpop.permute.xlu0 %961
    %965 = vset.pattern.permute.xlu0 0
    %966 = vperm.xlu0 %965, %v496
    %v967 = vpop.permute.xlu0 %966
    %970 = vset.pattern.permute.xlu0 0
    %971 = vperm.xlu0 %970, %v497
    %v972 = vpop.permute.xlu0 %971
    %975 = vset.pattern.permute.xlu0 0
    %976 = vperm.xlu0 %975, %v498
    %v977 = vpop.permute.xlu0 %976
    %v979 = vmul.f32 %v307, %v502
    %v980 = vmul.f32 %v308, %v507
    %v981 = vmul.f32 %v309, %v512
    %v982 = vmul.f32 %v310, %v517
    %v983 = vmul.f32 %v311, %v522
    %v984 = vmul.f32 %v312, %v527
    %v985 = vmul.f32 %v313, %v532
    %v986 = vmul.f32 %v314, %v537
    %v987 = vmul.f32 %v315, %v542
    %v988 = vmul.f32 %v316, %v547
    %v989 = vmul.f32 %v317, %v552
    %v990 = vmul.f32 %v318, %v557
    %v991 = vmul.f32 %v319, %v562
    %v992 = vmul.f32 %v320, %v567
    %v993 = vmul.f32 %v321, %v572
    %v994 = vmul.f32 %v322, %v577
    %v995 = vmul.f32 %v323, %v582
    %v996 = vmul.f32 %v324, %v587
    %v997 = vmul.f32 %v325, %v592
    %v998 = vmul.f32 %v326, %v597
    %v999 = vmul.f32 %v327, %v602
    %v1000 = vmul.f32 %v328, %v607
    %v1001 = vmul.f32 %v329, %v612
    %v1002 = vmul.f32 %v330, %v617
    %v1003 = vmul.f32 %v331, %v622
    %v1004 = vmul.f32 %v332, %v627
    %v1005 = vmul.f32 %v333, %v632
    %v1006 = vmul.f32 %v334, %v637
    %v1007 = vmul.f32 %v335, %v642
    %v1008 = vmul.f32 %v336, %v647
    %v1009 = vmul.f32 %v337, %v652
    %v1010 = vmul.f32 %v338, %v657
    %v1011 = vmul.f32 %v339, %v662
    %v1012 = vmul.f32 %v340, %v667
    %v1013 = vmul.f32 %v341, %v672
    %v1014 = vmul.f32 %v342, %v677
    %v1015 = vmul.f32 %v343, %v682
    %v1016 = vmul.f32 %v344, %v687
    %v1017 = vmul.f32 %v345, %v692
    %v1018 = vmul.f32 %v346, %v697
    %v1019 = vmul.f32 %v347, %v702
    %v1020 = vmul.f32 %v348, %v707
    %v1021 = vmul.f32 %v349, %v712
    %v1022 = vmul.f32 %v350, %v717
    %v1023 = vmul.f32 %v351, %v722
    %v1024 = vmul.f32 %v352, %v727
    %v1025 = vmul.f32 %v353, %v732
    %v1026 = vmul.f32 %v354, %v737
    %v1027 = vmul.f32 %v355, %v742
    %v1028 = vmul.f32 %v356, %v747
    %v1029 = vmul.f32 %v357, %v752
    %v1030 = vmul.f32 %v358, %v757
    %v1031 = vmul.f32 %v359, %v762
    %v1032 = vmul.f32 %v360, %v767
    %v1033 = vmul.f32 %v361, %v772
    %v1034 = vmul.f32 %v362, %v777
    %v1035 = vmul.f32 %v363, %v782
    %v1036 = vmul.f32 %v364, %v787
    %v1037 = vmul.f32 %v365, %v792
    %v1038 = vmul.f32 %v366, %v797
    %v1039 = vmul.f32 %v367, %v802
    %v1040 = vmul.f32 %v368, %v807
    %v1041 = vmul.f32 %v369, %v812
    %v1042 = vmul.f32 %v370, %v817
    %v1043 = vmul.f32 %v371, %v822
    %v1044 = vmul.f32 %v372, %v827
    %v1045 = vmul.f32 %v373, %v832
    %v1046 = vmul.f32 %v374, %v837
    %v1047 = vmul.f32 %v375, %v842
    %v1048 = vmul.f32 %v376, %v847
    %v1049 = vmul.f32 %v377, %v852
    %v1050 = vmul.f32 %v378, %v857
    %v1051 = vmul.f32 %v379, %v862
    %v1052 = vmul.f32 %v380, %v867
    %v1053 = vmul.f32 %v381, %v872
    %v1054 = vmul.f32 %v382, %v877
    %v1055 = vmul.f32 %v383, %v882
    %v1056 = vmul.f32 %v384, %v887
    %v1057 = vmul.f32 %v385, %v892
    %v1058 = vmul.f32 %v386, %v897
    %v1059 = vmul.f32 %v387, %v902
    %v1060 = vmul.f32 %v388, %v907
    %v1061 = vmul.f32 %v389, %v912
    %v1062 = vmul.f32 %v390, %v917
    %v1063 = vmul.f32 %v391, %v922
    %v1064 = vmul.f32 %v392, %v927
    %v1065 = vmul.f32 %v393, %v932
    %v1066 = vmul.f32 %v394, %v937
    %v1067 = vmul.f32 %v395, %v942
    %v1068 = vmul.f32 %v396, %v947
    %v1069 = vmul.f32 %v397, %v952
    %v1070 = vmul.f32 %v398, %v957
    %v1071 = vmul.f32 %v399, %v962
    %v1072 = vmul.f32 %v400, %v967
    %v1073 = vmul.f32 %v401, %v972
    %v1074 = vmul.f32 %v402, %v977
    %1075 = vst [vmem:[#allocation2] sm:$0xff] %v979
    %1076 = vst [vmem:[#allocation2 + $0x8] sm:$0xff] %v980
    %1077 = vst [vmem:[#allocation2 + $0x10] sm:$0xff] %v981
    %1078 = vst [vmem:[#allocation2 + $0x18] sm:$0xff] %v982
    %1079 = vst [vmem:[#allocation2 + $0x20] sm:$0xff] %v983
    %1080 = vst [vmem:[#allocation2 + $0x28] sm:$0xff] %v984
    %1081 = vst [vmem:[#allocation2 + $0x30] sm:$0xff] %v985
    %1082 = vst [vmem:[#allocation2 + $0x38] sm:$0xff] %v986
    %1083 = vst [vmem:[#allocation2 + $0x40] sm:$0xff] %v987
    %1084 = vst [vmem:[#allocation2 + $0x48] sm:$0xff] %v988
    %1085 = vst [vmem:[#allocation2 + $0x50] sm:$0xff] %v989
    %1086 = vst [vmem:[#allocation2 + $0x58] sm:$0xff] %v990
    %1087 = vst [vmem:[#allocation2 + $0x60] sm:$0xff] %v991
    %1088 = vst [vmem:[#allocation2 + $0x68] sm:$0xff] %v992
    %1089 = vst [vmem:[#allocation2 + $0x70] sm:$0xff] %v993
    %1090 = vst [vmem:[#allocation2 + $0x78] sm:$0xff] %v994
    %1091 = vst [vmem:[#allocation2 + $0x80] sm:$0xff] %v995
    %1092 = vst [vmem:[#allocation2 + $0x88] sm:$0xff] %v996
    %1093 = vst [vmem:[#allocation2 + $0x90] sm:$0xff] %v997
    %1094 = vst [vmem:[#allocation2 + $0x98] sm:$0xff] %v998
    %1095 = vst [vmem:[#allocation2 + $0xa0] sm:$0xff] %v999
    %1096 = vst [vmem:[#allocation2 + $0xa8] sm:$0xff] %v1000
    %1097 = vst [vmem:[#allocation2 + $0xb0] sm:$0xff] %v1001
    %1098 = vst [vmem:[#allocation2 + $0xb8] sm:$0xff] %v1002
    %1099 = vst [vmem:[#allocation2 + $0xc0] sm:$0xff] %v1003
    %1100 = vst [vmem:[#allocation2 + $0xc8] sm:$0xff] %v1004
    %1101 = vst [vmem:[#allocation2 + $0xd0] sm:$0xff] %v1005
    %1102 = vst [vmem:[#allocation2 + $0xd8] sm:$0xff] %v1006
    %1103 = vst [vmem:[#allocation2 + $0xe0] sm:$0xff] %v1007
    %1104 = vst [vmem:[#allocation2 + $0xe8] sm:$0xff] %v1008
    %1105 = vst [vmem:[#allocation2 + $0xf0] sm:$0xff] %v1009
    %1106 = vst [vmem:[#allocation2 + $0xf8] sm:$0xff] %v1010
    %1107 = vst [vmem:[#allocation2 + $0x100] sm:$0xff] %v1011
    %1108 = vst [vmem:[#allocation2 + $0x108] sm:$0xff] %v1012
    %1109 = vst [vmem:[#allocation2 + $0x110] sm:$0xff] %v1013
    %1110 = vst [vmem:[#allocation2 + $0x118] sm:$0xff] %v1014
    %1111 = vst [vmem:[#allocation2 + $0x120] sm:$0xff] %v1015
    %1112 = vst [vmem:[#allocation2 + $0x128] sm:$0xff] %v1016
    %1113 = vst [vmem:[#allocation2 + $0x130] sm:$0xff] %v1017
    %1114 = vst [vmem:[#allocation2 + $0x138] sm:$0xff] %v1018
    %1115 = vst [vmem:[#allocation2 + $0x140] sm:$0xff] %v1019
    %1116 = vst [vmem:[#allocation2 + $0x148] sm:$0xff] %v1020
    %1117 = vst [vmem:[#allocation2 + $0x150] sm:$0xff] %v1021
    %1118 = vst [vmem:[#allocation2 + $0x158] sm:$0xff] %v1022
    %1119 = vst [vmem:[#allocation2 + $0x160] sm:$0xff] %v1023
    %1120 = vst [vmem:[#allocation2 + $0x168] sm:$0xff] %v1024
    %1121 = vst [vmem:[#allocation2 + $0x170] sm:$0xff] %v1025
    %1122 = vst [vmem:[#allocation2 + $0x178] sm:$0xff] %v1026
    %1123 = vst [vmem:[#allocation2 + $0x180] sm:$0xff] %v1027
    %1124 = vst [vmem:[#allocation2 + $0x188] sm:$0xff] %v1028
    %1125 = vst [vmem:[#allocation2 + $0x190] sm:$0xff] %v1029
    %1126 = vst [vmem:[#allocation2 + $0x198] sm:$0xff] %v1030
    %1127 = vst [vmem:[#allocation2 + $0x1a0] sm:$0xff] %v1031
    %1128 = vst [vmem:[#allocation2 + $0x1a8] sm:$0xff] %v1032
    %1129 = vst [vmem:[#allocation2 + $0x1b0] sm:$0xff] %v1033
    %1130 = vst [vmem:[#allocation2 + $0x1b8] sm:$0xff] %v1034
    %1131 = vst [vmem:[#allocation2 + $0x1c0] sm:$0xff] %v1035
    %1132 = vst [vmem:[#allocation2 + $0x1c8] sm:$0xff] %v1036
    %1133 = vst [vmem:[#allocation2 + $0x1d0] sm:$0xff] %v1037
    %1134 = vst [vmem:[#allocation2 + $0x1d8] sm:$0xff] %v1038
    %1135 = vst [vmem:[#allocation2 + $0x1e0] sm:$0xff] %v1039
    %1136 = vst [vmem:[#allocation2 + $0x1e8] sm:$0xff] %v1040
    %1137 = vst [vmem:[#allocation2 + $0x1f0] sm:$0xff] %v1041
    %1138 = vst [vmem:[#allocation2 + $0x1f8] sm:$0xff] %v1042
    %1139 = vst [vmem:[#allocation2 + $0x200] sm:$0xff] %v1043
    %1140 = vst [vmem:[#allocation2 + $0x208] sm:$0xff] %v1044
    %1141 = vst [vmem:[#allocation2 + $0x210] sm:$0xff] %v1045
    %1142 = vst [vmem:[#allocation2 + $0x218] sm:$0xff] %v1046
    %1143 = vst [vmem:[#allocation2 + $0x220] sm:$0xff] %v1047
    %1144 = vst [vmem:[#allocation2 + $0x228] sm:$0xff] %v1048
    %1145 = vst [vmem:[#allocation2 + $0x230] sm:$0xff] %v1049
    %1146 = vst [vmem:[#allocation2 + $0x238] sm:$0xff] %v1050
    %1147 = vst [vmem:[#allocation2 + $0x240] sm:$0xff] %v1051
    %1148 = vst [vmem:[#allocation2 + $0x248] sm:$0xff] %v1052
    %1149 = vst [vmem:[#allocation2 + $0x250] sm:$0xff] %v1053
    %1150 = vst [vmem:[#allocation2 + $0x258] sm:$0xff] %v1054
    %1151 = vst [vmem:[#allocation2 + $0x260] sm:$0xff] %v1055
    %1152 = vst [vmem:[#allocation2 + $0x268] sm:$0xff] %v1056
    %1153 = vst [vmem:[#allocation2 + $0x270] sm:$0xff] %v1057
    %1154 = vst [vmem:[#allocation2 + $0x278] sm:$0xff] %v1058
    %1155 = vst [vmem:[#allocation2 + $0x280] sm:$0xff] %v1059
    %1156 = vst [vmem:[#allocation2 + $0x288] sm:$0xff] %v1060
    %1157 = vst [vmem:[#allocation2 + $0x290] sm:$0xff] %v1061
    %1158 = vst [vmem:[#allocation2 + $0x298] sm:$0xff] %v1062
    %1159 = vst [vmem:[#allocation2 + $0x2a0] sm:$0xff] %v1063
    %1160 = vst [vmem:[#allocation2 + $0x2a8] sm:$0xff] %v1064
    %1161 = vst [vmem:[#allocation2 + $0x2b0] sm:$0xff] %v1065
    %1162 = vst [vmem:[#allocation2 + $0x2b8] sm:$0xff] %v1066
    %1163 = vst [vmem:[#allocation2 + $0x2c0] sm:$0xff] %v1067
    %1164 = vst [vmem:[#allocation2 + $0x2c8] sm:$0xff] %v1068
    %1165 = vst [vmem:[#allocation2 + $0x2d0] sm:$0xff] %v1069
    %1166 = vst [vmem:[#allocation2 + $0x2d8] sm:$0xff] %v1070
    %1167 = vst [vmem:[#allocation2 + $0x2e0] sm:$0xff] %v1071
    %1168 = vst [vmem:[#allocation2 + $0x2e8] sm:$0xff] %v1072
    %1169 = vst [vmem:[#allocation2 + $0x2f0] sm:$0xff] %v1073
    %1170 = vst [vmem:[#allocation2 + $0x2f8] sm:$0xff] %v1074
    // Predicated region
    $region10: #{tpu_custom_call.1} parent=1 // pred_check
      _
    $region11: #{tpu_custom_call.1} parent=1 // pred_check_branch
      %1172 = sbr.rel (0) target = $region13
    $region12: #{tpu_custom_call.1} parent=1 // pred_region
      %s1174 = ssub.s32 12288, 12288
      %1175 = vsyncadd [#allocation3], %s1174
      %s1176 = sshll.u32 [#allocation2], 4
      %s1177 = int_to_ptr.vmem [resolvable:$true] %s1176
      %1182 = dma.vmem_to_hbm [thread:$0]  %s1177, 12288, %s2, [#allocation3], 128, 128, 8
    $region13: #{tpu_custom_call.1} parent=1 // pred_fallthru
      _
    // Predicated region
    $region14: #{tpu_custom_call.1} parent=1 // pred_check
      _
    $region15: #{tpu_custom_call.1} parent=1 // pred_check_branch
      %1184 = sbr.rel (0) target = $region17
    $region16: #{tpu_custom_call.1} parent=1 // pred_region
      %1185 = dma.done [#allocation3], 12288
    $region17: #{tpu_custom_call.1} parent=1 // pred_fallthru
      _
    %1186 = vsyncpa [#allocation3], 1

</llo_original>
